<compile_context>
chip_gen: v7x
topology: tpu7x:2x2x1
jax: 0.10.0
libtpu: 0.0.40
codegen_flags: <defaults>
</compile_context>

<pallas_src>
import functools

import jax
import jax.numpy as jnp
from jax.experimental import pallas as pl
from jax.experimental.pallas import tpu as pltpu


# ---------------------------------------------------------------------------
# pltpu.roll shift-direction probe (one tiny kernel, cached for the process)
# ---------------------------------------------------------------------------
_ROLL_FORWARD = None


def _roll_is_forward():
    """True iff pltpu.roll(x, s, axis) == jnp.roll (out[j] = in[j - s])."""
    global _ROLL_FORWARD
    if _ROLL_FORWARD is None:
        def probe(x_ref, o_ref):
            o_ref[...] = pltpu.roll(x_ref[...], 1, 1)

        x = jnp.zeros((8, 128), jnp.float32).at[0, 5].set(1.0)
        y = pl.pallas_call(
            probe, out_shape=jax.ShapeDtypeStruct((8, 128), jnp.float32))(x)
        _ROLL_FORWARD = bool(y[0, 6] == 1.0)
    return _ROLL_FORWARD


# ---------------------------------------------------------------------------
# In-kernel helpers
# ---------------------------------------------------------------------------
def _roll_right(t, s, forward):
    """Circular shift toward higher flat indices: out[..., j] = t[..., j - s]."""
    n = t.shape[-1]
    if n % 128 != 0:
        # Lane-unaligned rows (rare shapes): zero-fill shift fallback, which is
        # identical to the circular roll given the zero-embedded seed tails.
        zeros = jnp.zeros(t.shape[:-1] + (s,), t.dtype)
        return jnp.concatenate([zeros, t[..., : n - s]], axis=-1)
    shift = s if forward else (n - s) % n
    return pltpu.roll(t, shift, 1)


def _covered(seed_f32, block_size, w, forward):
    """bs x bs box dilation (max / OR) of seeds on flattened (tbc, H*W) rows.

    covered[r, y*W + x] > 0.5  iff some seed at (y-di, x-dj), di,dj in [0, bs),
    covers pixel (y, x).  Each roll's wrapped / row-crossing elements are read
    from the zero-padded tail columns / tail rows, so the flat rolls are exact.
    """
    if block_size <= 1:
        return seed_f32

    def dilate(t, unit):
        width = 1
        while 2 * width <= block_size:          # log-doubling OR
            t = jnp.maximum(t, _roll_right(t, width * unit, forward))
            width *= 2
        if width < block_size:                  # residual to reach exactly bs
            t = jnp.maximum(t, _roll_right(t, (block_size - width) * unit,
                                           forward))
        return t

    t = dilate(seed_f32, 1)                     # along W (lane direction)
    return dilate(t, w)                         # along H (stride W in flat row)


# ---------------------------------------------------------------------------
# Kernel A: per-tile count of dropped pixels (reads only the int8 seed)
# ---------------------------------------------------------------------------
def _count_kernel(seed_ref, cnt_ref, *, block_size, w, forward):
    seed = seed_ref[...].astype(jnp.float32)            # (tbc, H*W)
    cov = _covered(seed, block_size, w, forward)
    drop = jnp.where(cov > 0.5, 1.0, 0.0)
    part = jnp.sum(drop, axis=1, keepdims=True)         # (tbc, 1)  lane reduce
    tile_cnt = jnp.sum(part, axis=0, keepdims=True)     # (1, 1)    sublane reduce
    cnt_ref[...] = jnp.broadcast_to(tile_cnt, cnt_ref.shape)   # (1, 128)


# ---------------------------------------------------------------------------
# Kernel B: pipelined elementwise apply  out = where(covered, 0, x * scale)
# ---------------------------------------------------------------------------
def _apply_kernel(scale_ref, seed_ref, x_ref, o_ref, *, block_size, w, forward):
    seed = seed_ref[...].astype(jnp.float32)            # (tbc, H*W)
    cov = _covered(seed, block_size, w, forward)
    scale = scale_ref[0, 0]                              # scalar from SMEM
    xs = x_ref[...].astype(jnp.float32) * scale
    o_ref[...] = jnp.where(cov > 0.5, 0.0, xs).astype(o_ref.dtype)


# ---------------------------------------------------------------------------
# Tiling / VMEM budgets
# ---------------------------------------------------------------------------
def _ceil_div(a, b):
    return -(-a // b)


def _budgets():
    """(target f32 x-tile bytes, vmem_limit_bytes) sized per TPU generation."""
    vmem_cap = 64 * 1024 * 1024                  # conservative: v7x per-TC VMEM
    try:
        info = pltpu.get_tpu_info()
        vmem_cap = int(getattr(info, "vmem_capacity_bytes", vmem_cap))
    except Exception:
        pass
    if vmem_cap >= 100 * 1024 * 1024:            # v5e / v6e: 128 MiB VMEM
        return 6 * 1024 * 1024, 80 * 1024 * 1024
    return 5 * 1024 * 1024 // 2, 32 * 1024 * 1024   # v7x / unknown: 2.5 MiB tiles


def _pick_bc_tile(bc, hw, x_bytes, target_bytes):
    """Rows (B*C) per tile: multiple of 8, >= 2 tiles when bc > 8, ~even split."""
    if bc <= 8:
        return bc
    budget = max(8, (target_bytes // max(1, hw * x_bytes)) // 8 * 8)
    cap = max(8, ((bc - 1) // 8) * 8)            # tbc < bc  =>  >= 2 grid tiles
    nt = _ceil_div(bc, min(budget, cap))         # tile count implied by budget
    tbc = min(cap, _ceil_div(_ceil_div(bc, nt), 8) * 8)   # even split, less pad
    return tbc


# ---------------------------------------------------------------------------
# Wrapper
# ---------------------------------------------------------------------------
def dropblock_pallas(x, mask, block_size, training=True):
    """DropBlock forward.

    x:    (B, C, H, W) float
    mask: (B, C, H-bs+1, W-bs+1) Bernoulli(gamma) seed mask (0/1, any dtype)
    """
    if not training:
        return x

    b, c, h, w = x.shape
    hm, wm = h - (block_size - 1), w - (block_size - 1)
    assert mask.shape == (b, c, hm, wm)
    bc, hw = b * c, h * w

    # Zero-embed the seeds at the top-left of the full (H, W) grid, flatten
    # every image to one lane-dense H*W row, stream as int8 (1 B/px of mask
    # HBM traffic).  Reshapes of contiguous NCHW data are free at XLA level.
    seed2 = jnp.pad(
        mask.astype(jnp.int8),
        ((0, 0), (0, 0), (0, block_size - 1), (0, block_size - 1)),
    ).reshape(bc, hw)
    x2 = x.reshape(bc, hw)

    target_bytes, vmem_limit = _budgets()
    tbc = _pick_bc_tile(bc, hw, x.dtype.itemsize, target_bytes)
    nt = pl.cdiv(bc, tbc)
    bc_pad = nt * tbc
    if bc_pad != bc:                 # non-divisor B*C: zero-pad the row axis
        seed2 = jnp.pad(seed2, ((0, bc_pad - bc), (0, 0)))
        x2 = jnp.pad(x2, ((0, bc_pad - bc), (0, 0)))
    # (nt, tbc, hw): each block spans the full last two dims -> no packed-dtype
    # sublane-window constraints for the int8 seed, plain leading-dim DMA.
    seed3 = seed2.reshape(nt, tbc, hw)
    x3 = x2.reshape(nt, tbc, hw)
    # TODO(synk): for very large H*W (8*hw*4B >> a few MiB) add an H-axis grid
    # dimension with a (bs-1)-row halo instead of row-only tiling.

    forward = _roll_is_forward()
    cparams = pltpu.CompilerParams(
        dimension_semantics=("parallel",),
        vmem_limit_bytes=vmem_limit,
    )
    tile_spec = pl.BlockSpec((None, tbc, hw), lambda i: (i, 0, 0))

    # ---- Kernel A: per-tile dropped-pixel counts --------------------------
    counts = pl.pallas_call(
        functools.partial(_count_kernel, block_size=block_size, w=w,
                          forward=forward),
        out_shape=jax.ShapeDtypeStruct((nt, 1, 128), jnp.float32),
        grid=(nt,),
        in_specs=[tile_spec],
        out_specs=pl.BlockSpec((None, 1, 128), lambda i: (i, 0, 0)),
        compiler_params=cparams,
    )(seed3)

    # ---- Tiny scalar reduction in JAX glue (countM / count_ones) ----------
    count_total = jnp.float32(bc * hw)
    count_dropped = jnp.sum(counts[:, 0, 0])
    # Clamp only guards the degenerate "everything dropped" case (Inf/NaN in
    # the PyTorch reference too); identical otherwise.
    count_ones = jnp.maximum(count_total - count_dropped, jnp.float32(1.0))
    scale = (count_total / count_ones).reshape(1, 1).astype(jnp.float32)

    # ---- Kernel B: pipelined lane-dense apply ------------------------------
    out3 = pl.pallas_call(
        functools.partial(_apply_kernel, block_size=block_size, w=w,
                          forward=forward),
        out_shape=jax.ShapeDtypeStruct((nt, tbc, hw), x.dtype),
        grid=(nt,),
        in_specs=[
            pl.BlockSpec(memory_space=pltpu.MemorySpace.SMEM),   # scale (1,1)
            tile_spec,                                           # seed (int8)
            tile_spec,                                           # x
        ],
        out_specs=tile_spec,
        compiler_params=cparams,
    )(scale, seed3, x3)

    out2 = out3.reshape(bc_pad, hw)
    if bc_pad != bc:
        out2 = out2[:bc]
    return out2.reshape(b, c, h, w)


# ---------------------------------------------------------------------------
# Pure-JAX reference matching the PyTorch semantics
# ---------------------------------------------------------------------------
def dropblock_ref(x, mask, block_size):
    b, c, h, w = x.shape
    seed_full = jnp.pad(
        mask.astype(jnp.float32),
        ((0, 0), (0, 0), (0, block_size - 1), (0, block_size - 1)))
    covered = jax.lax.reduce_window(
        seed_full, 0.0, jax.lax.max,
        window_dimensions=(1, 1, block_size, block_size),
        window_strides=(1, 1, 1, 1),
        padding=((0, 0), (0, 0), (block_size - 1, 0), (block_size - 1, 0)))
    block_mask = 1.0 - jnp.where(covered > 0.5, 1.0, 0.0)
    count_m = b * c * h * w
    count_ones = block_mask.sum()
    return block_mask * x * (count_m / count_ones)


if __name__ == "__main__":
    key = jax.random.PRNGKey(0)
    kx, km = jax.random.split(key)

    B, C, H, W = 2, 16, 16, 16          # bc=32 -> tbc=16, grid=(2,)
    block_size = 3
    gamma = 0.1

    x = jax.random.normal(kx, (B, C, H, W), dtype=jnp.float32)
    # TODO(synk): Bernoulli seed sampling stays in plain JAX (it is module-
    # external randomness in the PyTorch spec); an in-kernel pltpu.prng_*
    # variant would remove this HBM stream entirely but changes the API.
    mask = jax.random.bernoulli(
        km, gamma, (B, C, H - (block_size - 1), W - (block_size - 1)))

    out = jax.block_until_ready(dropblock_pallas(x, mask, block_size,
                                                 training=True))
    ref = dropblock_ref(x, mask, block_size)

    assert out.shape == x.shape and out.dtype == x.dtype
    err = jnp.max(jnp.abs(out - ref))
    assert jnp.allclose(out, ref, rtol=1e-5, atol=1e-5), f"max err {err}"
    print("KERNEL_OK")
</pallas_src>

<mosaic_0001>
module attributes {stable_mosaic.version = 11 : i64} {
  func.func @probe(%arg0: memref<8x128xf32, #tpu.memory_space<vmem>>, %arg1: memref<8x128xf32, #tpu.memory_space<vmem>>) attributes {dimension_semantics = [], scalar_prefetch = 0 : i64, scratch_operands = 0 : i64, tpu.core_type = #tpu.core_type<tc>} {
    %c0 = arith.constant 0 : index
    %c0_0 = arith.constant 0 : index
    %0 = vector.load %arg0[%c0, %c0_0] : memref<8x128xf32, #tpu.memory_space<vmem>>, vector<8x128xf32>
    %c1_i32 = arith.constant 1 : i32
    %1 = tpu.dynamic_rotate %0 by %c1_i32 dim 1 : vector<8x128xf32>, i32 -> vector<8x128xf32>
    %c0_1 = arith.constant 0 : index
    %c0_2 = arith.constant 0 : index
    %2 = vector.load %arg1[%c0_1, %c0_2] : memref<8x128xf32, #tpu.memory_space<vmem>>, vector<8x128xf32>
    tpu.vector_store %arg1[%c0_1, %c0_2], %1 {strides = array<i32>} : memref<8x128xf32, #tpu.memory_space<vmem>>, vector<8x128xf32>,
    return
  }
}

</mosaic_0001>

<llo_original>
// kernel: tpu_custom_call.1
$region0: #{tpu_custom_call.1}
  #allocation0 [shape = 'u32[]', space=smem, size = 0x4, offset = 0x4, fixed_abs, tag = 'smem constant byte address 0x4 - core index']
  #allocation1 [shape = 'u32[144,128]{1,0:T(1,128)}', space=vmem, size = 0x12000, scoped, tag = 'internal scratch']
  %s0 = inlined_call_operand.hbm [shape: f32[8,128], index: 0, kind: input, shape index: {}]
  %s1 = inlined_call_operand.hbm [shape: f32[8,128], index: 1, kind: output, shape index: {}]
  %s2 = sld [smem:[#allocation0]]
  $region18: #{tpu_custom_call.1} parent=0
    _
  %s4 = ssub.s32 1, %s2
  %s5 = scalar_select 0, %s4, %s2
  $region1: #{tpu_custom_call.1} parent=0
    #allocation2 [shape = 'u8[4096]{0}', space=vmem, size = 0x1000, scoped, tag = 'input window, operand 0, single buffered']
    #allocation3 [shape = 's32[1]{0}', space=sflag, size = 0x4, scoped, tag = 'scoped memory for tpu_custom_call.1']
    #allocation4 [shape = 's32[1]{0}', space=sflag, size = 0x4, scoped, tag = 'scoped memory for tpu_custom_call.1']
    #allocation5 [shape = 'u8[4096]{0}', space=vmem, size = 0x1000, scoped, tag = 'output window, operand 0, single buffered']
    %6 = vsyncpa [#allocation3], 0
    %7 = vsyncpa [#allocation4], 0
    // Predicated region
    $region2: #{tpu_custom_call.1} parent=1 // pred_check
      _
    $region3: #{tpu_custom_call.1} parent=1 // pred_check_branch
      %9 = sbr.rel (0) target = $region5
    $region4: #{tpu_custom_call.1} parent=1 // pred_region
      %s11 = ssub.s32 128, 128
      %12 = vsyncadd [#allocation3], %s11
      %s14 = sshll.u32 [#allocation2], 4
      %s15 = int_to_ptr.vmem [resolvable:$true] %s14
      %17 = dma.hbm_to_vmem [thread:$0]  %s0, 128, %s15, [#allocation3]
    $region5: #{tpu_custom_call.1} parent=1 // pred_fallthru
      _
    // Predicated region
    $region6: #{tpu_custom_call.1} parent=1 // pred_check
      _
    $region7: #{tpu_custom_call.1} parent=1 // pred_check_branch
      %19 = sbr.rel (0) target = $region9
    $region8: #{tpu_custom_call.1} parent=1 // pred_region
      %20 = dma.done [#allocation3], 128
    $region9: #{tpu_custom_call.1} parent=1 // pred_fallthru
      _
    %v21 = vld [vmem:[#allocation2] sm:$0xff]
    %22 = vrot.lane.b32.xlu0 %v21, 1
    %v23 = vpop.permute.xlu0 %22
    %24 = vst [vmem:[#allocation5] sm:$0xff] %v23
    // Predicated region
    $region10: #{tpu_custom_call.1} parent=1 // pred_check
      _
    $region11: #{tpu_custom_call.1} parent=1 // pred_check_branch
      %26 = sbr.rel (0) target = $region13
    $region12: #{tpu_custom_call.1} parent=1 // pred_region
      %s28 = ssub.s32 128, 128
      %29 = vsyncadd [#allocation4], %s28
      %s31 = sshll.u32 [#allocation5], 4
      %s32 = int_to_ptr.vmem [resolvable:$true] %s31
      %34 = dma.vmem_to_hbm [thread:$0]  %s32, 128, %s1, [#allocation4]
    $region13: #{tpu_custom_call.1} parent=1 // pred_fallthru
      _
    // Predicated region
    $region14: #{tpu_custom_call.1} parent=1 // pred_check
      _
    $region15: #{tpu_custom_call.1} parent=1 // pred_check_branch
      %36 = sbr.rel (0) target = $region17
    $region16: #{tpu_custom_call.1} parent=1 // pred_region
      %37 = dma.done [#allocation4], 128
    $region17: #{tpu_custom_call.1} parent=1 // pred_fallthru
      _
    %38 = vsyncpa [#allocation3], 1
    %39 = vsyncpa [#allocation4], 1

</llo_original>
